<compile_context>
chip_gen: v7x
topology: tpu7x:2x2x1
jax: 0.10.0
libtpu: 0.0.40
codegen_flags: <defaults>
</compile_context>

<pallas_src>
import numpy as np
import jax
import jax.numpy as jnp
from jax import lax
from jax.experimental import pallas as pl
from jax.experimental.pallas import tpu as pltpu


def _build_pe(d_model: int, max_len: int = 500) -> jnp.ndarray:
    """Buffer setup (glue, plain JAX): sin/cos positional table, identical to torch."""
    position = np.arange(max_len, dtype=np.float32)[:, None]            # (max_len, 1)
    div_term = np.exp(np.arange(0, d_model, 2, dtype=np.float32)
                      * (-np.log(10000.0) / d_model))                   # (d_model/2,)
    pe = np.zeros((max_len, d_model), dtype=np.float32)
    pe[:, 0::2] = np.sin(position * div_term)
    pe[:, 1::2] = np.cos(position * div_term)
    return jnp.asarray(pe)


def _choose_tile_rows(n_rows: int, width: int, itemsize: int,
                      tile_bytes_target: int = 2 * 1024 * 1024) -> int:
    """Largest row tile s.t. double-buffered x/out tiles (~4x tile bytes) stay far
    below the default scoped VMEM on every generation (16 MiB v5e / 32 MiB v6e,v7x)."""
    per_row = max(1, width * itemsize)
    rows = max(1, tile_bytes_target // per_row)
    if rows >= n_rows:
        return n_rows                      # full extent -> always a legal block dim
    return max(8, (rows // 8) * 8)         # keep sublane (8) alignment


def _make_kernel(p: float, training: bool, tile_rows: int, width: int):
    """Kernel body factory. p / training / tile_rows / width are static."""
    scale = 1.0 / (1.0 - p) if p < 1.0 else 0.0
    apply_dropout = bool(training) and p > 0.0
    # Drop iff bits < thresh  =>  P(drop) = thresh / 2^32 = p  (raw uint32 compare,
    # no float convert / shift / multiply on the hot path).
    thresh = np.uint32(min(int(round(p * 4294967296.0)), 0xFFFFFFFF))

    def kernel(seed_ref, x_ref, pe_ref, o_ref):
        # Hot path: broadcasted add (VPU).  pe_ref is (1, W) and stays resident.
        y = x_ref[...] + pe_ref[...]                      # (TS, W) + (1, W)
        if apply_dropout:
            # Counter-based uniform bits: lowbias32 hash of the global element index
            # mixed with the seed.  Unique index per element across all grid tiles.
            row = lax.broadcasted_iota(jnp.uint32, y.shape, 0)
            col = lax.broadcasted_iota(jnp.uint32, y.shape, 1)
            base = (pl.program_id(0) * tile_rows).astype(jnp.uint32)
            gidx = (row + base) * jnp.uint32(width) + col
            seed = seed_ref[0].astype(jnp.uint32)
            h = gidx ^ (seed * jnp.uint32(0x9E3779B9))
            h = h ^ (h >> jnp.uint32(16))
            h = h * jnp.uint32(0x7FEB352D)
            h = h ^ (h >> jnp.uint32(15))
            h = h * jnp.uint32(0x846CA68B)
            h = h ^ (h >> jnp.uint32(16))
            keep = h >= thresh
            y = jnp.where(keep, y * scale, 0.0)
        o_ref[...] = y.astype(o_ref.dtype)

    return kernel


def positional_encoding_forward(x, pe, *, p: float = 0.1, training: bool = True,
                                seed: int = 0):
    """x: (seq_len, batch, d_model); pe: (max_len, d_model). Returns same shape as x."""
    S, B, D = x.shape
    W = B * D

    # Glue (outside the kernel): slice the buffer and materialize the exact
    # trailing-dim broadcast of the module, then flatten to a lane-dense row.
    pe_slice = pe[:S]                                               # (S, D)
    pe_row = jnp.broadcast_to(pe_slice, (B, D)).astype(x.dtype).reshape(1, W)
    x2 = x.reshape(S, W)                                            # lane-dense view

    tile_rows = _choose_tile_rows(S, W, x.dtype.itemsize)
    grid = (pl.cdiv(S, tile_rows),)
    seed_arr = jnp.asarray([seed], dtype=jnp.int32)

    kernel = _make_kernel(p, training, tile_rows, W)

    out2 = pl.pallas_call(
        kernel,
        out_shape=jax.ShapeDtypeStruct((S, W), x.dtype),
        grid=grid,
        in_specs=[
            pl.BlockSpec(memory_space=pltpu.MemorySpace.SMEM),      # seed scalar
            pl.BlockSpec((tile_rows, W), lambda i: (i, 0)),         # x row tile
            pl.BlockSpec((1, W), lambda i: (0, 0)),                 # pe, resident
        ],
        out_specs=pl.BlockSpec((tile_rows, W), lambda i: (i, 0)),
        compiler_params=pltpu.CompilerParams(
            dimension_semantics=("parallel",)),                     # megacore on v7x
    )(seed_arr, x2, pe_row)

    return out2.reshape(S, B, D)


if __name__ == "__main__":
    d_model = 32
    seq_len = 8
    batch = 8           # the module's `x + pe[:S]` broadcast requires batch == seq_len
    p = 0.1

    key = jax.random.PRNGKey(0)
    x = jax.random.normal(key, (seq_len, batch, d_model), dtype=jnp.float32)
    pe = _build_pe(d_model, max_len=500)

    # Train-mode forward (dropout active).
    out = positional_encoding_forward(x, pe, p=p, training=True, seed=0)
    out = jax.block_until_ready(out)

    # Reference add with the same trailing-dim broadcast rule.
    y_ref = np.asarray(x) + np.asarray(pe[:seq_len])
    out_np = np.asarray(out)
    assert out_np.shape == x.shape and out_np.dtype == np.float32
    kept = out_np != 0.0
    assert kept.any()                       # not everything dropped at p=0.1
    assert np.allclose(out_np[kept], (y_ref / (1.0 - p))[kept], rtol=1e-5, atol=1e-5)

    # Eval-mode forward (dropout off) must equal the plain add exactly.
    out_eval = jax.block_until_ready(
        positional_encoding_forward(x, pe, p=p, training=False))
    assert np.allclose(np.asarray(out_eval), y_ref, rtol=1e-6, atol=1e-6)

    print("KERNEL_OK")
</pallas_src>

<mosaic_0001>
module attributes {stable_mosaic.version = 11 : i64} {
  func.func @kernel(%arg0: i32, %arg1: memref<1xi32, #tpu.memory_space<smem>>, %arg2: memref<8x256xf32, #tpu.memory_space<vmem>>, %arg3: memref<1x256xf32, #tpu.memory_space<vmem>>, %arg4: memref<8x256xf32, #tpu.memory_space<vmem>>) attributes {dimension_semantics = [#tpu.dimension_semantics<parallel>], iteration_bounds = array<i64: 1>, scalar_prefetch = 0 : i64, scratch_operands = 0 : i64, tpu.core_type = #tpu.core_type<tc>, window_params = [{transform_indices = @transform_0, window_bounds = array<i64: 1>}, {transform_indices = @transform_1, window_bounds = array<i64: 8, 256>}, {pipeline_mode = #tpu.pipeline_mode<synchronous>, transform_indices = @transform_2, window_bounds = array<i64: 1, 256>}, {transform_indices = @transform_3, window_bounds = array<i64: 8, 256>}]} {
    %c0 = arith.constant 0 : index
    %c0_0 = arith.constant 0 : index
    %0 = vector.load %arg2[%c0, %c0_0] : memref<8x256xf32, #tpu.memory_space<vmem>>, vector<8x256xf32>
    %c0_1 = arith.constant 0 : index
    %c0_2 = arith.constant 0 : index
    %1 = vector.load %arg3[%c0_1, %c0_2] : memref<1x256xf32, #tpu.memory_space<vmem>>, vector<1x256xf32>
    %2 = vector.broadcast %1 : vector<1x256xf32> to vector<8x256xf32>
    %3 = arith.addf %0, %2 : vector<8x256xf32>
    %4 = tpu.iota {dimensions = array<i32: 0>} : vector<8x256xi32>
    %5 = tpu.iota {dimensions = array<i32: 1>} : vector<8x256xi32>
    %c8_i32 = arith.constant 8 : i32
    %6 = arith.muli %arg0, %c8_i32 : i32
    %7 = vector.broadcast %6 : i32 to vector<8x256xi32>
    %8 = arith.addi %4, %7 : vector<8x256xi32>
    %c256_i32 = arith.constant 256 : i32
    %9 = vector.broadcast %c256_i32 : i32 to vector<8x256xi32>
    %10 = arith.muli %8, %9 : vector<8x256xi32>
    %11 = arith.addi %10, %5 : vector<8x256xi32>
    %c0_3 = arith.constant 0 : index
    %12 = memref.load %arg1[%c0_3] : memref<1xi32, #tpu.memory_space<smem>>
    %c-1640531527_i32 = arith.constant -1640531527 : i32
    %13 = arith.muli %12, %c-1640531527_i32 : i32
    %14 = vector.broadcast %13 : i32 to vector<8x256xi32>
    %15 = arith.xori %11, %14 : vector<8x256xi32>
    %c16_i32 = arith.constant 16 : i32
    %16 = vector.broadcast %c16_i32 : i32 to vector<8x256xi32>
    %17 = arith.shrui %15, %16 : vector<8x256xi32>
    %18 = arith.xori %15, %17 : vector<8x256xi32>
    %c2146121005_i32 = arith.constant 2146121005 : i32
    %19 = vector.broadcast %c2146121005_i32 : i32 to vector<8x256xi32>
    %20 = arith.muli %18, %19 : vector<8x256xi32>
    %c15_i32 = arith.constant 15 : i32
    %21 = vector.broadcast %c15_i32 : i32 to vector<8x256xi32>
    %22 = arith.shrui %20, %21 : vector<8x256xi32>
    %23 = arith.xori %20, %22 : vector<8x256xi32>
    %c-2073254261_i32 = arith.constant -2073254261 : i32
    %24 = vector.broadcast %c-2073254261_i32 : i32 to vector<8x256xi32>
    %25 = arith.muli %23, %24 : vector<8x256xi32>
    %c16_i32_4 = arith.constant 16 : i32
    %26 = vector.broadcast %c16_i32_4 : i32 to vector<8x256xi32>
    %27 = arith.shrui %25, %26 : vector<8x256xi32>
    %28 = arith.xori %25, %27 : vector<8x256xi32>
    %c429496730_i32 = arith.constant 429496730 : i32
    %29 = vector.broadcast %c429496730_i32 : i32 to vector<8x256xi32>
    %30 = arith.cmpi uge, %28, %29 : vector<8x256xi32>
    %cst = arith.constant 1.11111116 : f32
    %31 = vector.broadcast %cst : f32 to vector<8x256xf32>
    %32 = arith.mulf %3, %31 : vector<8x256xf32>
    %cst_5 = arith.constant 0.000000e+00 : f32
    %33 = vector.broadcast %cst_5 : f32 to vector<8x256xf32>
    %34 = arith.select %30, %32, %33 : vector<8x256xi1>, vector<8x256xf32>
    %c0_6 = arith.constant 0 : index
    %c0_7 = arith.constant 0 : index
    %35 = vector.load %arg4[%c0_6, %c0_7] : memref<8x256xf32, #tpu.memory_space<vmem>>, vector<8x256xf32>
    tpu.vector_store %arg4[%c0_6, %c0_7], %34 {strides = array<i32>} : memref<8x256xf32, #tpu.memory_space<vmem>>, vector<8x256xf32>,
    return
  }
  func.func @transform_0(%arg0: i32) -> i32 {
    %c0_i32 = arith.constant 0 : i32
    %c0_i32_0 = arith.constant 0 : i32
    return %c0_i32 : i32
  }
  func.func @transform_1(%arg0: i32) -> (i32, i32) {
    %c0_i32 = arith.constant 0 : i32
    %c0_i32_0 = arith.constant 0 : i32
    return %arg0, %c0_i32 : i32, i32
  }
  func.func @transform_2(%arg0: i32) -> (i32, i32) {
    %c0_i32 = arith.constant 0 : i32
    %c0_i32_0 = arith.constant 0 : i32
    %c0_i32_1 = arith.constant 0 : i32
    return %c0_i32, %c0_i32_0 : i32, i32
  }
  func.func @transform_3(%arg0: i32) -> (i32, i32) {
    %c0_i32 = arith.constant 0 : i32
    %c0_i32_0 = arith.constant 0 : i32
    return %arg0, %c0_i32 : i32, i32
  }
}

</mosaic_0001>

<llo_original>
// kernel: tpu_custom_call.1
$region0: #{tpu_custom_call.1}
  #allocation0 [shape = 'u32[]', space=smem, size = 0x4, offset = 0x4, fixed_abs, tag = 'smem constant byte address 0x4 - core index']
  #allocation1 [shape = 'u32[144,128]{1,0:T(1,128)}', space=vmem, size = 0x12000, scoped, tag = 'internal scratch']
  #allocation2 [shape = 's32[1]{0:T(128)S(6)}', space=smem, size = 0x200, scoped, tag = 'scoped memory for tpu_custom_call.1']
  %s0 = inlined_call_operand.<no memory space> [shape: s32[1], index: 0, kind: input, shape index: {}]
  %s1 = inlined_call_operand.hbm [shape: f32[8,256], index: 1, kind: input, shape index: {}]
  %s2 = inlined_call_operand.vmem [shape: f32[1,256], index: 2, kind: input, shape index: {}]
  %s3 = inlined_call_operand.hbm [shape: f32[8,256], index: 3, kind: output, shape index: {}]
  %s4 = sld [smem:[#allocation0]]
  $region26: #{tpu_custom_call.1} parent=0
    _
  %s6 = ssub.s32 1, %s4
  %s7 = scalar_select 0, %s6, %s4
  %8 = sst [smem:[#allocation2]] %s0
  $region1: #{tpu_custom_call.1} parent=0
    #allocation3 [shape = 'u8[8192]{0}', space=vmem, size = 0x2000, scoped, tag = 'input window, operand 1, single buffered']
    #allocation4 [shape = 's32[1]{0}', space=sflag, size = 0x4, scoped, tag = 'scoped memory for tpu_custom_call.1']
    #allocation5 [shape = 's32[1]{0}', space=sflag, size = 0x4, scoped, tag = 'scoped memory for tpu_custom_call.1']
    #allocation6 [shape = 'u8[8192]{0}', space=vmem, size = 0x2000, scoped, tag = 'output window, operand 0, single buffered']
    %9 = vsyncpa [#allocation4], 0
    %10 = vsyncpa [#allocation5], 0
    // Predicated region
    $region2: #{tpu_custom_call.1} parent=1 // pred_check
      _
    $region3: #{tpu_custom_call.1} parent=1 // pred_check_branch
      %12 = sbr.rel (0) target = $region5
    $region4: #{tpu_custom_call.1} parent=1 // pred_region
      _
    $region5: #{tpu_custom_call.1} parent=1 // pred_fallthru
      _
    // Predicated region
    $region6: #{tpu_custom_call.1} parent=1 // pred_check
      _
    $region7: #{tpu_custom_call.1} parent=1 // pred_check_branch
      %14 = sbr.rel (0) target = $region9
    $region8: #{tpu_custom_call.1} parent=1 // pred_region
      %s16 = ssub.s32 256, 256
      %17 = vsyncadd [#allocation4], %s16
      %s19 = sshll.u32 [#allocation3], 4
      %s20 = int_to_ptr.vmem [resolvable:$true] %s19
      %22 = dma.hbm_to_vmem [thread:$0]  %s1, 256, %s20, [#allocation4]
    $region9: #{tpu_custom_call.1} parent=1 // pred_fallthru
      _
    // Predicated region
    $region10: #{tpu_custom_call.1} parent=1 // pred_check
      _
    $region11: #{tpu_custom_call.1} parent=1 // pred_check_branch
      %24 = sbr.rel (0) target = $region13
    $region12: #{tpu_custom_call.1} parent=1 // pred_region
      _
    $region13: #{tpu_custom_call.1} parent=1 // pred_fallthru
      _
    // Predicated region
    $region14: #{tpu_custom_call.1} parent=1 // pred_check
      _
    $region15: #{tpu_custom_call.1} parent=1 // pred_check_branch
      %26 = sbr.rel (0) target = $region17
    $region16: #{tpu_custom_call.1} parent=1 // pred_region
      %27 = dma.done [#allocation4], 256
    $region17: #{tpu_custom_call.1} parent=1 // pred_fallthru
      _
    %v28 = vld [vmem:[#allocation3] sm:$0xff]
    %v29 = vld [vmem:[#allocation3 + $0x8] sm:$0xff]
    %v30 = vld [vmem:[%s2] sm:$0x3]
    %v32 = vlaneseq
    %v33 = vshrl.u32 %v32, 7
    %v34 = vsub.s32 0, %v33
    %v35 = vrot.slane %v30, %v34
    %v36 = vlaneseq
    %v37 = vshrl.u32 %v36, 7
    %v38 = vsub.s32 1, %v37
    %v39 = vrot.slane %v30, %v38
    %v42 = vadd.f32 %v28, %v35
    %v43 = vadd.f32 %v29, %v39
    %v44 = vlaneseq
    %v45 = vshrl.u32 %v44, 7
    %v46 = vlaneseq
    %v47 = vand.u32 %v46, 127
    %v48 = vadd.s32 %v47, 128
    %s49 = smul.u32 0, 8
    %v50 = vstv %s49
    %v51 = vadd.s32 %v45, %v50
    %v52 = vmul.u32 %v51, 256
    %v53 = vadd.s32 %v52, %v47
    %v54 = vadd.s32 %v52, %v48
    %s55 = sld [smem:[#allocation2]]
    %s56 = smul.u32 %s55, 2654435769
    %v57 = vstv %s56
    %v58 = vxor.u32 %v53, %v57
    %v59 = vxor.u32 %v54, %v57
    %v60 = vshrl.u32 %v58, 16
    %v61 = vshrl.u32 %v59, 16
    %v62 = vxor.u32 %v58, %v60
    %v63 = vxor.u32 %v59, %v61
    %v64 = vmul.u32 %v62, 2146121005
    %v65 = vmul.u32 %v63, 2146121005
    %v66 = vshrl.u32 %v64, 15
    %v67 = vshrl.u32 %v65, 15
    %v68 = vxor.u32 %v64, %v66
    %v69 = vxor.u32 %v65, %v67
    %v70 = vmul.u32 %v68, 2221713035
    %v71 = vmul.u32 %v69, 2221713035
    %v72 = vshrl.u32 %v70, 16
    %v73 = vshrl.u32 %v71, 16
    %v74 = vxor.u32 %v70, %v72
    %v75 = vxor.u32 %v71, %v73
    %vm76 = vcmp.ge.u32.totalorder %v74, 429496730
    %vm77 = vcmp.ge.u32.totalorder %v75, 429496730
    %v78 = vmul.f32 %v42, 1.1111112
    %v79 = vmul.f32 %v43, 1.1111112
    %v80 = vsel %vm76, %v78, 0.0
    %v81 = vsel %vm77, %v79, 0.0
    %82 = vst [vmem:[#allocation6] sm:$0xff] %v80
    %83 = vst [vmem:[#allocation6 + $0x8] sm:$0xff] %v81
    // Predicated region
    $region18: #{tpu_custom_call.1} parent=1 // pred_check
      _
    $region19: #{tpu_custom_call.1} parent=1 // pred_check_branch
      %85 = sbr.rel (0) target = $region21
    $region20: #{tpu_custom_call.1} parent=1 // pred_region
      %s87 = ssub.s32 256, 256
      %88 = vsyncadd [#allocation5], %s87
      %s90 = sshll.u32 [#allocation6], 4
      %s91 = int_to_ptr.vmem [resolvable:$true] %s90
      %93 = dma.vmem_to_hbm [thread:$0]  %s91, 256, %s3, [#allocation5]
    $region21: #{tpu_custom_call.1} parent=1 // pred_fallthru
      _
    // Predicated region
    $region22: #{tpu_custom_call.1} parent=1 // pred_check
      _
    $region23: #{tpu_custom_call.1} parent=1 // pred_check_branch
      %95 = sbr.rel (0) target = $region25
    $region24: #{tpu_custom_call.1} parent=1 // pred_region
      %96 = dma.done [#allocation5], 256
    $region25: #{tpu_custom_call.1} parent=1 // pred_fallthru
      _
    %97 = vsyncpa [#allocation4], 1
    %98 = vsyncpa [#allocation5], 1

</llo_original>
